<compile_context>
chip_gen: v6e
topology: v6e:2x2x1
jax: 0.10.0
libtpu: 0.0.40
codegen_flags: <defaults>
</compile_context>

<pallas_src>
import jax
import jax.numpy as jnp
from jax.experimental import pallas as pl
from jax.experimental.pallas import tpu as pltpu

BN_EPS = 1e-3


def _fused_kernel(x_ref, w_ref, g_ref, b_ref, o_ref):
    # x_ref: (M, Cin)   f32  (resident across the Cout grid: constant index_map)
    # w_ref: (Cin, Tco) bf16 (channel scale already folded in)
    # g_ref: (1, Tco)   f32  BN weight
    # b_ref: (1, Tco)   f32  BN bias
    # o_ref: (M, Tco)   f32
    xb = x_ref[...].astype(jnp.bfloat16)                 # in-VMEM cast -> native bf16 MXU
    y = jnp.dot(xb, w_ref[...], preferred_element_type=jnp.float32)   # (M, Tco) f32

    # BatchNorm2d in training mode: biased batch statistics over the N*H*W rows.
    m = y.shape[0]
    mean = jnp.sum(y, axis=0, keepdims=True) * (1.0 / m)     # (1, Tco)
    diff = y - mean
    var = jnp.sum(diff * diff, axis=0, keepdims=True) * (1.0 / m)
    inv = jax.lax.rsqrt(var + BN_EPS)
    o_ref[...] = diff * (inv * g_ref[...]) + b_ref[...]


def fused_mul_conv1x1_bn_2d(x_mc, w_folded_bf16, gamma, beta, *, tile_co=128):
    """Core fused op on the flattened layout.

    x_mc:          (M, Cin)  float32, M = N*H*W (channels on the 128-lane axis)
    w_folded_bf16: (Cin, Cout) bfloat16, already multiplied by the channel scale
    gamma, beta:   (Cout,) float32
    """
    M, Cin = x_mc.shape
    Cout = w_folded_bf16.shape[1]
    tco = tile_co if (Cout % tile_co == 0) else Cout   # fall back to a single tile
    g2d = gamma.reshape(1, Cout).astype(jnp.float32)
    b2d = beta.reshape(1, Cout).astype(jnp.float32)

    return pl.pallas_call(
        _fused_kernel,
        out_shape=jax.ShapeDtypeStruct((M, Cout), jnp.float32),
        grid=(Cout // tco,),
        in_specs=[
            pl.BlockSpec((M, Cin), lambda j: (0, 0)),     # x: resident, no re-DMA per tile
            pl.BlockSpec((Cin, tco), lambda j: (0, j)),   # weight: streamed per Cout tile
            pl.BlockSpec((1, tco), lambda j: (0, j)),     # gamma
            pl.BlockSpec((1, tco), lambda j: (0, j)),     # beta
        ],
        out_specs=pl.BlockSpec((M, tco), lambda j: (0, j)),
        compiler_params=pltpu.CompilerParams(
            dimension_semantics=("parallel",),            # Cout tiles are independent
        ),
    )(x_mc, w_folded_bf16, g2d, b2d)


def fused_mul_conv1x1_bn(x_nchw, scale_1c11, w_oi11, gamma, beta):
    """NCHW wrapper matching the PyTorch module interface.

    TODO(synk): in a full model, keep activations NHWC across layers so the two
    transposes below (full HBM read+write of x and out) are not paid on every call.
    """
    N, Cin, H, W = x_nchw.shape
    Cout = w_oi11.shape[0]
    M = N * H * W

    x_mc = jnp.transpose(x_nchw, (0, 2, 3, 1)).reshape(M, Cin)
    # Fold the per-channel scale into the weight in f32, then quantize to bf16.
    w_t = jnp.transpose(w_oi11.reshape(Cout, Cin), (1, 0))          # (Cin, Cout)
    w_folded = (w_t * scale_1c11.reshape(Cin, 1)).astype(jnp.bfloat16)

    out2d = fused_mul_conv1x1_bn_2d(x_mc, w_folded, gamma, beta)
    return jnp.transpose(out2d.reshape(N, H, W, Cout), (0, 3, 1, 2))


# ---------------------------------------------------------------------------
# References for validation
# ---------------------------------------------------------------------------
def _reference_f32(x_nchw, scale_1c11, w_oi11, gamma, beta):
    """Full-f32 math, exactly the PyTorch module semantics (training-mode BN)."""
    xs = x_nchw * scale_1c11
    w2 = w_oi11.reshape(w_oi11.shape[0], w_oi11.shape[1])
    y = jnp.einsum("nihw,oi->nohw", xs, w2)
    mean = jnp.mean(y, axis=(0, 2, 3), keepdims=True)
    var = jnp.mean((y - mean) ** 2, axis=(0, 2, 3), keepdims=True)
    return (y - mean) * jax.lax.rsqrt(var + BN_EPS) * gamma.reshape(1, -1, 1, 1) \
        + beta.reshape(1, -1, 1, 1)


def _reference_matched(x_nchw, scale_1c11, w_oi11, gamma, beta):
    """Same bf16-folded-weight math as the kernel, in plain XLA (structure check)."""
    N, Cin, H, W = x_nchw.shape
    Cout = w_oi11.shape[0]
    x_mc = jnp.transpose(x_nchw, (0, 2, 3, 1)).reshape(-1, Cin)
    w_t = jnp.transpose(w_oi11.reshape(Cout, Cin), (1, 0))
    w_folded = (w_t * scale_1c11.reshape(Cin, 1)).astype(jnp.bfloat16)
    y = jnp.dot(x_mc.astype(jnp.bfloat16), w_folded, preferred_element_type=jnp.float32)
    mean = jnp.mean(y, axis=0, keepdims=True)
    var = jnp.mean((y - mean) ** 2, axis=0, keepdims=True)
    out2d = (y - mean) * jax.lax.rsqrt(var + BN_EPS) * gamma.reshape(1, -1) + beta.reshape(1, -1)
    return jnp.transpose(out2d.reshape(N, H, W, Cout), (0, 3, 1, 2))


if __name__ == "__main__":
    # Small shapes consistent with the module structure
    # (original: N=1, Cin=2304, Cout=384, H=W=7)
    N, Cin, Cout, H, W = 2, 256, 256, 8, 8

    key = jax.random.PRNGKey(0)
    k_x, k_s, k_w, k_g, k_b = jax.random.split(key, 5)

    x949 = jax.random.normal(k_x, (N, Cin, H, W), dtype=jnp.float32)       # main input
    x954 = jax.random.normal(k_s, (1, Cin, 1, 1), dtype=jnp.float32)       # channel scale
    conv_w = jax.random.normal(k_w, (Cout, Cin, 1, 1), dtype=jnp.float32) * (1.0 / Cin) ** 0.5
    bn_gamma = 1.0 + 0.1 * jax.random.normal(k_g, (Cout,), dtype=jnp.float32)
    bn_beta = 0.1 * jax.random.normal(k_b, (Cout,), dtype=jnp.float32)

    out = fused_mul_conv1x1_bn(x949, x954, conv_w, bn_gamma, bn_beta)
    out = jax.block_until_ready(out)
    assert out.shape == (N, Cout, H, W)

    # Tight check: kernel vs identical bf16-folded math in plain XLA (structure correct).
    ref_matched = _reference_matched(x949, x954, conv_w, bn_gamma, bn_beta)
    assert jnp.allclose(out, ref_matched, atol=1e-3, rtol=1e-3), "mismatch vs matched ref"

    # Loose check: vs full-f32 PyTorch-equivalent math (bounded bf16 weight quant error).
    ref_f32 = _reference_f32(x949, x954, conv_w, bn_gamma, bn_beta)
    assert jnp.allclose(out, ref_f32, atol=2e-2, rtol=2e-2), "mismatch vs f32 reference"

    print("KERNEL_OK")
</pallas_src>

<mosaic_0001>
module attributes {stable_mosaic.version = 11 : i64} {
  func.func @_fused_kernel(%arg0: i32, %arg1: memref<128x256xf32, #tpu.memory_space<vmem>>, %arg2: memref<256x128xbf16, #tpu.memory_space<vmem>>, %arg3: memref<1x128xf32, #tpu.memory_space<vmem>>, %arg4: memref<1x128xf32, #tpu.memory_space<vmem>>, %arg5: memref<128x128xf32, #tpu.memory_space<vmem>>) attributes {dimension_semantics = [#tpu.dimension_semantics<parallel>], iteration_bounds = array<i64: 2>, scalar_prefetch = 0 : i64, scratch_operands = 0 : i64, tpu.core_type = #tpu.core_type<tc>, window_params = [{pipeline_mode = #tpu.pipeline_mode<synchronous>, transform_indices = @transform_0, window_bounds = array<i64: 128, 256>}, {transform_indices = @transform_1, window_bounds = array<i64: 256, 128>}, {transform_indices = @transform_2, window_bounds = array<i64: 1, 128>}, {transform_indices = @transform_3, window_bounds = array<i64: 1, 128>}, {transform_indices = @transform_4, window_bounds = array<i64: 128, 128>}]} {
    %c0 = arith.constant 0 : index
    %c0_0 = arith.constant 0 : index
    %0 = vector.load %arg1[%c0, %c0_0] : memref<128x256xf32, #tpu.memory_space<vmem>>, vector<128x256xf32>
    %1 = arith.truncf %0 : vector<128x256xf32> to vector<128x256xbf16>
    %c0_1 = arith.constant 0 : index
    %c0_2 = arith.constant 0 : index
    %2 = vector.load %arg2[%c0_1, %c0_2] : memref<256x128xbf16, #tpu.memory_space<vmem>>, vector<256x128xbf16>
    %cst = arith.constant dense<0.000000e+00> : vector<128x128xf32>
    %3 = tpu.matmul %1, %2, %cst {dimension_numbers = #tpu.dot_dimension_numbers<[1], [0], [0], [1], [0, 0, 1, 1], [], []>} : vector<128x256xbf16>, vector<256x128xbf16>, vector<128x128xf32> -> vector<128x128xf32>
    %cst_3 = arith.constant dense<0.000000e+00> : vector<128xf32>
    %4 = vector.multi_reduction <add>, %3, %cst_3 [0] : vector<128x128xf32> to vector<128xf32>
    %5 = vector.shape_cast %4 : vector<128xf32> to vector<1x128xf32>
    %cst_4 = arith.constant 7.812500e-03 : f32
    %6 = vector.broadcast %cst_4 : f32 to vector<1x128xf32>
    %7 = arith.mulf %5, %6 : vector<1x128xf32>
    %8 = vector.broadcast %7 : vector<1x128xf32> to vector<128x128xf32>
    %9 = arith.subf %3, %8 : vector<128x128xf32>
    %10 = arith.mulf %9, %9 : vector<128x128xf32>
    %cst_5 = arith.constant dense<0.000000e+00> : vector<128xf32>
    %11 = vector.multi_reduction <add>, %10, %cst_5 [0] : vector<128x128xf32> to vector<128xf32>
    %12 = vector.shape_cast %11 : vector<128xf32> to vector<1x128xf32>
    %cst_6 = arith.constant 7.812500e-03 : f32
    %13 = vector.broadcast %cst_6 : f32 to vector<1x128xf32>
    %14 = arith.mulf %12, %13 : vector<1x128xf32>
    %cst_7 = arith.constant 1.000000e-03 : f32
    %15 = vector.broadcast %cst_7 : f32 to vector<1x128xf32>
    %16 = arith.addf %14, %15 : vector<1x128xf32>
    %17 = math.rsqrt %16 : vector<1x128xf32>
    %c0_8 = arith.constant 0 : index
    %c0_9 = arith.constant 0 : index
    %18 = vector.load %arg3[%c0_8, %c0_9] : memref<1x128xf32, #tpu.memory_space<vmem>>, vector<1x128xf32>
    %19 = arith.mulf %17, %18 : vector<1x128xf32>
    %20 = vector.broadcast %19 : vector<1x128xf32> to vector<128x128xf32>
    %21 = arith.mulf %9, %20 : vector<128x128xf32>
    %c0_10 = arith.constant 0 : index
    %c0_11 = arith.constant 0 : index
    %22 = vector.load %arg4[%c0_10, %c0_11] : memref<1x128xf32, #tpu.memory_space<vmem>>, vector<1x128xf32>
    %23 = vector.broadcast %22 : vector<1x128xf32> to vector<128x128xf32>
    %24 = arith.addf %21, %23 : vector<128x128xf32>
    %c0_12 = arith.constant 0 : index
    %c0_13 = arith.constant 0 : index
    %25 = vector.load %arg5[%c0_12, %c0_13] : memref<128x128xf32, #tpu.memory_space<vmem>>, vector<128x128xf32>
    tpu.vector_store %arg5[%c0_12, %c0_13], %24 {strides = array<i32>} : memref<128x128xf32, #tpu.memory_space<vmem>>, vector<128x128xf32>,
    return
  }
  func.func @transform_0(%arg0: i32) -> (i32, i32) {
    %c0_i32 = arith.constant 0 : i32
    %c0_i32_0 = arith.constant 0 : i32
    %c0_i32_1 = arith.constant 0 : i32
    return %c0_i32, %c0_i32_0 : i32, i32
  }
  func.func @transform_1(%arg0: i32) -> (i32, i32) {
    %c0_i32 = arith.constant 0 : i32
    %c0_i32_0 = arith.constant 0 : i32
    return %c0_i32, %arg0 : i32, i32
  }
  func.func @transform_2(%arg0: i32) -> (i32, i32) {
    %c0_i32 = arith.constant 0 : i32
    %c0_i32_0 = arith.constant 0 : i32
    return %c0_i32, %arg0 : i32, i32
  }
  func.func @transform_3(%arg0: i32) -> (i32, i32) {
    %c0_i32 = arith.constant 0 : i32
    %c0_i32_0 = arith.constant 0 : i32
    return %c0_i32, %arg0 : i32, i32
  }
  func.func @transform_4(%arg0: i32) -> (i32, i32) {
    %c0_i32 = arith.constant 0 : i32
    %c0_i32_0 = arith.constant 0 : i32
    return %c0_i32, %arg0 : i32, i32
  }
}

</mosaic_0001>

<llo_original>
// kernel: tpu_custom_call.1
$region0: #{tpu_custom_call.1}
  #allocation0 [shape = 'u32[]', space=smem, size = 0x4, offset = 0x4, fixed_abs, tag = 'smem constant byte address 0x4 - core index']
  #allocation1 [shape = 'u32[144,128]{1,0:T(1,128)}', space=vmem, size = 0x12000, scoped, tag = 'internal scratch']
  %s0 = inlined_call_operand.hbm [shape: f32[128,256], index: 0, kind: input, shape index: {}]
  %s1 = inlined_call_operand.hbm [shape: bf16[256,256], index: 1, kind: input, shape index: {}]
  %s2 = inlined_call_operand.vmem [shape: f32[1,256], index: 2, kind: input, shape index: {}]
  %s3 = inlined_call_operand.vmem [shape: f32[1,256], index: 3, kind: input, shape index: {}]
  %s4 = inlined_call_operand.hbm [shape: f32[128,256], index: 4, kind: output, shape index: {}]
  %s5 = sld [smem:[#allocation0]]
  $region57: #{tpu_custom_call.1} parent=0
    _
  %s7 = ssub.s32 1, %s5
  %s8 = scalar_select 0, %s7, %s5
  $region1: #{tpu_custom_call.1} parent=0
    #allocation2 [shape = 'u8[131072]{0}', space=vmem, size = 0x20000, scoped, tag = 'input window, operand 0, single buffered']
    #allocation3 [shape = 's32[2]{0}', space=sflag, size = 0x8, scoped, tag = 'scoped memory for tpu_custom_call.1']
    #allocation4 [shape = 's32[2]{0}', space=sflag, size = 0x8, scoped, tag = 'scoped memory for tpu_custom_call.1']
    #allocation5 [shape = 'u8[131072]{0}', space=vmem, size = 0x20000, scoped, tag = 'input window, operand 1']
    #allocation6 [shape = 's32[2]{0}', space=sflag, size = 0x8, scoped, tag = 'scoped memory for tpu_custom_call.1']
    #allocation7 [shape = 'u8[131072]{0}', space=vmem, size = 0x20000, scoped, tag = 'output window, operand 0']
    %9 = vsyncpa [#allocation3], 0
    %10 = vsyncpa [#allocation6], 0
    %s11 = scalar_lea.sflag [#allocation6], 1
    %12 = vsyncpa %s11, 0
    %13 = vsyncpa [#allocation4], 0
    %s14 = scalar_lea.sflag [#allocation4], 1
    %15 = vsyncpa %s14, 0
    loop: start=0, step=1, limit=4
    $region2: #{tpu_custom_call.1} parent=1 // loop_pre_header
      _
    $region3: #{tpu_custom_call.1} parent=1 // loop_header
      %s17 = sphi 0, %s21
      %p18 = scmp.ge.s32.totalorder %s17, 4
      %s25 = sphi 0, %s25
      %s27 = sphi 0, %s25
      %s28 = sphi 0, %s27
      %s42 = sphi 0, %s28
      %s48 = sphi 0, %s50
      %s51 = sphi 0, %s48
      %s52 = sphi 0, %s51
      %s68 = sphi 0, %s52
      %s74 = sphi 0, %s76
      %s77 = sphi 0, %s74
      %s78 = sphi 0, %s77
      %s94 = sphi 0, %s78
      %s100 = sphi 0, %s102
      %s103 = sphi 0, %s100
      %s104 = sphi 0, %s103
      %s120 = sphi 0, %s104
      %s126 = sphi 0, %s128
      %s129 = sphi 0, %s126
      %s130 = sphi 0, %s129
      %s146 = sphi 0, %s130
    $region4: #{tpu_custom_call.1} parent=1 // loop_header_branch
      %20 = sbr.rel (%p18) target = $region8
    $region5: #{tpu_custom_call.1} parent=1 // loop_body
      %s22 = ssub.s32 %s17, 1
      %s23 = ssub.s32 %s17, 2
      %s24 = sadd.s32 %s17, 1
      %s26 = sadd.s32 %s25, 1
      %p29 = scmp.eq.s32.totalorder %s17, 1
      %p30 = scmp.ne.s32.totalorder %s25, %s27
      %p31 = scmp.eq.s32.totalorder %s17, 0
      %p32 = por %p30, %p31
      %p33 = scmp.ne.s32.totalorder %s25, %s27
      %p34 = scmp.eq.s32.totalorder %s22, 1
      %p35 = por %p33, %p34
      %p36 = scmp.ne.s32.totalorder %s27, %s28
      %p37 = scmp.eq.s32.totalorder %s22, 0
      %p38 = por %p36, %p37
      %p39 = scmp.ne.s32.totalorder %s27, %s28
      %p40 = scmp.eq.s32.totalorder %s23, 1
      %p41 = por %p39, %p40
      %p43 = scmp.ne.s32.totalorder %s28, %s42
      %p44 = scmp.eq.s32.totalorder %s23, 0
      %p45 = por %p43, %p44
      %s46 = ssub.s32 %s17, %s24
      %p47 = scmp.eq.s32.totalorder %s46, 0
      %s49 = sadd.s32 %s48, 1
      %s50 = scalar_select %p47, %s48, %s49
      %p53 = pneg %p47
      %p54 = scmp.eq.s32.totalorder %s17, 1
      %p55 = por %p53, %p54
      %p56 = scmp.ne.s32.totalorder %s48, %s51
      %p57 = scmp.eq.s32.totalorder %s17, 0
      %p58 = por %p56, %p57
      %p59 = scmp.ne.s32.totalorder %s48, %s51
      %p60 = scmp.eq.s32.totalorder %s22, 1
      %p61 = por %p59, %p60
      %p62 = scmp.ne.s32.totalorder %s51, %s52
      %p63 = scmp.eq.s32.totalorder %s22, 0
      %p64 = por %p62, %p63
      %p65 = scmp.ne.s32.totalorder %s51, %s52
      %p66 = scmp.eq.s32.totalorder %s23, 1
      %p67 = por %p65, %p66
      %p69 = scmp.ne.s32.totalorder %s52, %s68
      %p70 = scmp.eq.s32.totalorder %s23, 0
      %p71 = por %p69, %p70
      %s72 = ssub.s32 %s17, %s24
      %p73 = scmp.eq.s32.totalorder %s72, 0
      %s75 = sadd.s32 %s74, 1
      %s76 = scalar_select %p73, %s74, %s75
      %p79 = pneg %p73
      %p80 = scmp.eq.s32.totalorder %s17, 1
      %p81 = por %p79, %p80
      %p82 = scmp.ne.s32.totalorder %s74, %s77
      %p83 = scmp.eq.s32.totalorder %s17, 0
      %p84 = por %p82, %p83
      %p85 = scmp.ne.s32.totalorder %s74, %s77
      %p86 = scmp.eq.s32.totalorder %s22, 1
      %p87 = por %p85, %p86
      %p88 = scmp.ne.s32.totalorder %s77, %s78
      %p89 = scmp.eq.s32.totalorder %s22, 0
      %p90 = por %p88, %p89
      %p91 = scmp.ne.s32.totalorder %s77, %s78
      %p92 = scmp.eq.s32.totalorder %s23, 1
      %p93 = por %p91, %p92
      %p95 = scmp.ne.s32.totalorder %s78, %s94
      %p96 = scmp.eq.s32.totalorder %s23, 0
      %p97 = por %p95, %p96
      %s98 = ssub.s32 %s17, %s24
      %p99 = scmp.eq.s32.totalorder %s98, 0
      %s101 = sadd.s32 %s100, 1
      %s102 = scalar_select %p99, %s100, %s101
      %p105 = pneg %p99
      %p106 = scmp.eq.s32.totalorder %s17, 1
      %p107 = por %p105, %p106
      %p108 = scmp.ne.s32.totalorder %s100, %s103
      %p109 = scmp.eq.s32.totalorder %s17, 0
      %p110 = por %p108, %p109
      %p111 = scmp.ne.s32.totalorder %s100, %s103
      %p112 = scmp.eq.s32.totalorder %s22, 1
      %p113 = por %p111, %p112
      %p114 = scmp.ne.s32.totalorder %s103, %s104
      %p115 = scmp.eq.s32.totalorder %s22, 0
      %p116 = por %p114, %p115
      %p117 = scmp.ne.s32.totalorder %s103, %s104
      %p118 = scmp.eq.s32.totalorder %s23, 1
      %p119 = por %p117, %p118
      %p121 = scmp.ne.s32.totalorder %s104, %s120
      %p122 = scmp.eq.s32.totalorder %s23, 0
      %p123 = por %p121, %p122
      %s124 = ssub.s32 %s17, %s24
      %p125 = scmp.eq.s32.totalorder %s124, 0
      %s127 = sadd.s32 %s126, 1
      %s128 = scalar_select %p125, %s126, %s127
      %p131 = pneg %p125
      %p132 = scmp.eq.s32.totalorder %s17, 1
      %p133 = por %p131, %p132
      %p134 = scmp.ne.s32.totalorder %s126, %s129
      %p135 = scmp.eq.s32.totalorder %s17, 0
      %p136 = por %p134, %p135
      %p137 = scmp.ne.s32.totalorder %s126, %s129
      %p138 = scmp.eq.s32.totalorder %s22, 1
      %p139 = por %p137, %p138
      %p140 = scmp.ne.s32.totalorder %s129, %s130
      %p141 = scmp.eq.s32.totalorder %s22, 0
      %p142 = por %p140, %p141
      %p143 = scmp.ne.s32.totalorder %s129, %s130
      %p144 = scmp.eq.s32.totalorder %s23, 1
      %p145 = por %p143, %p144
      %p147 = scmp.ne.s32.totalorder %s130, %s146
      %p148 = scmp.eq.s32.totalorder %s23, 0
      %p149 = por %p147, %p148
      %p150 = scmp.le.s32.totalorder 1, %s17
      %p151 = scmp.lt.s32.totalorder %s17, 3
      %p152 = pnand %p150, %p151
      %p153 = pneg %p152
      // Predicated region
      $region9: #{tpu_custom_call.1} parent=5 // pred_check
        _
      $region10: #{tpu_custom_call.1} parent=5 // pred_check_branch
        %155 = sbr.rel (%p152) target = $region12
      $region11: #{tpu_custom_call.1} parent=5 // pred_region
        %s156 = ssub.s32 %s17, 1
        // Predicated region
        $region13: #{tpu_custom_call.1} parent=11 // pred_check
          %p157 = pneg %p38
        $region14: #{tpu_custom_call.1} parent=11 // pred_check_branch
          %159 = sbr.rel (%p157) target = $region16
        $region15: #{tpu_custom_call.1} parent=11 // pred_region
          %s161 = ssub.s32 4096, 4096
          %162 = vsyncadd [#allocation3], %s161
          %s163 = sshll.u32 [#allocation2], 4
          %s164 = int_to_ptr.vmem [resolvable:$true] %s163
          %169 = dma.hbm_to_vmem [thread:$0]  %s0, 4096, %s164, [#allocation3], 256, 256, 16
        $region16: #{tpu_custom_call.1} parent=11 // pred_fallthru
          _
      $region12: #{tpu_custom_call.1} parent=5 // pred_fallthru
        _
      %p170 = scmp.lt.s32.totalorder %s17, 2
      // Predicated region
      $region17: #{tpu_custom_call.1} parent=5 // pred_check
        %p171 = pneg %p170
      $region18: #{tpu_custom_call.1} parent=5 // pred_check_branch
        %173 = sbr.rel (%p171) target = $region20
      $region19: #{tpu_custom_call.1} parent=5 // pred_region
        // Predicated region
        $region21: #{tpu_custom_call.1} parent=19 // pred_check
          %p174 = pneg %p58
        $region22: #{tpu_custom_call.1} parent=19 // pred_check_branch
          %176 = sbr.rel (%p174) target = $region24
        $region23: #{tpu_custom_call.1} parent=19 // pred_region
          %s177 = sand.u32 %s48, 1
          %s178 = scalar_lea.sflag [#allocation6], %s177
          %s179 = sand.u32 %s48, 1
          %s180 = smul.addr %s179, 128
          %s181 = scalar_lea.vmem [#allocation5], %s180
          %s183 = ssub.s32 2048, 2048
          %184 = vsyncadd %s178, %s183
          %s185 = smul.addr %s17, 64
          %s186 = scalar_lea.hbm %s1, %s185
          %s187 = sshll.u32 %s181, 4
          %s188 = int_to_ptr.vmem [resolvable:$true] %s187
          %193 = dma.hbm_to_vmem [thread:$0]  %s186, 2048, %s188, %s178, 128, 64, 4
        $region24: #{tpu_custom_call.1} parent=19 // pred_fallthru
          _
        // Predicated region
        $region25: #{tpu_custom_call.1} parent=19 // pred_check
          %p194 = pneg %p84
        $region26: #{tpu_custom_call.1} parent=19 // pred_check_branch
          %196 = sbr.rel (%p194) target = $region28
        $region27: #{tpu_custom_call.1} parent=19 // pred_region
          %p197 = scmp.lt.s32.totalorder %s17, 1
          %s198 = scalar_select %p197, %s17, 1
          %s199 = scalar_lea.vmem %s2, %s198
        $region28: #{tpu_custom_call.1} parent=19 // pred_fallthru
          _
        // Predicated region
        $region29: #{tpu_custom_call.1} parent=19 // pred_check
          %p200 = pneg %p110
        $region30: #{tpu_custom_call.1} parent=19 // pred_check_branch
          %202 = sbr.rel (%p200) target = $region32
        $region31: #{tpu_custom_call.1} parent=19 // pred_region
          %p203 = scmp.lt.s32.totalorder %s17, 1
          %s204 = scalar_select %p203, %s17, 1
          %s205 = scalar_lea.vmem %s3, %s204
        $region32: #{tpu_custom_call.1} parent=19 // pred_fallthru
          _
      $region20: #{tpu_custom_call.1} parent=5 // pred_fallthru
        _
      %p206 = scmp.le.s32.totalorder 1, %s17
      %p207 = scmp.lt.s32.totalorder %s17, 3
      %p208 = pnand %p206, %p207
      %p209 = pneg %p208
      // Predicated region
      $region33: #{tpu_custom_call.1} parent=5 // pred_check
        _
      $region34: #{tpu_custom_call.1} parent=5 // pred_check_branch
        %211 = sbr.rel (%p208) target = $region36
      $region35: #{tpu_custom_call.1} parent=5 // pred_region
        %s212 = ssub.s32 %s17, 1
        // Predicated region
        $region37: #{tpu_custom_call.1} parent=35 // pred_check
          %p213 = pneg %p38
        $region38: #{tpu_custom_call.1} parent=35 // pred_check_branch
          %215 = sbr.rel (%p213) target = $region40
        $region39: #{tpu_custom_call.1} parent=35 // pred_region
          %216 = dma.done [#allocation3], 4096
        $region40: #{tpu_custom_call.1} parent=35 // pred_fallthru
          _
        %s217 = sand.u32 %s51, 1
        %s218 = scalar_lea.sflag [#allocation6], %s217
        %s219 = sand.u32 %s51, 1
        %s220 = smul.addr %s219, 128
        %s221 = scalar_lea.vmem [#allocation5], %s220
        // Predicated region
        $region41: #{tpu_custom_call.1} parent=35 // pred_check
          %p222 = pneg %p64
        $region42: #{tpu_custom_call.1} parent=35 // pred_check_branch
          %224 = sbr.rel (%p222) target = $region44
        $region43: #{tpu_custom_call.1} parent=35 // pred_region
          %225 = dma.done %s218, 2048
        $region44: #{tpu_custom_call.1} parent=35 // pred_fallthru
          _
        %p226 = pneg %p38
        %p227 = pneg %p35
        %s228 = sand.u32 %s51, 1
        %s229 = scalar_lea.sflag [#allocation6], %s228
        %s230 = sand.u32 %s51, 1
        %s231 = smul.addr %s230, 128
        %s232 = scalar_lea.vmem [#allocation5], %s231
        %p233 = pneg %p64
        %p234 = pneg %p61
        %p235 = scmp.lt.s32.totalorder %s22, 1
        %s236 = scalar_select %p235, %s22, 1
        %s237 = scalar_lea.vmem %s2, %s236
        %p238 = pneg %p90
        %p239 = pneg %p87
        %p240 = scmp.lt.s32.totalorder %s22, 1
        %s241 = scalar_select %p240, %s22, 1
        %s242 = scalar_lea.vmem %s3, %s241
        %p243 = pneg %p116
        %p244 = pneg %p113
        %p245 = pneg %p142
        %p246 = pneg %p139
        %s247 = sand.u32 %s129, 1
        %s248 = scalar_lea.sflag [#allocation4], %s247
        %s249 = sand.u32 %s129, 1
        %s250 = smul.addr %s249, 128
        %s251 = scalar_lea.vmem [#allocation7], %s250
        %p252 = scmp.lt.s32.totalorder %s22, 1
        %s253 = scalar_select %p252, %s22, 1
        %s254 = scalar_lea.vmem %s2, %s253
        %p255 = scmp.lt.s32.totalorder %s22, 1
        %s256 = scalar_select %p255, %s22, 1
        %s257 = scalar_lea.vmem %s3, %s256
        %v259 = vld [vmem:[#allocation2] sm:$0xff]
        %v260 = vld [vmem:[#allocation2 + $0x8] sm:$0xff]
        %v261 = vld [vmem:[#allocation2 + $0x10] sm:$0xff]
        %v262 = vld [vmem:[#allocation2 + $0x18] sm:$0xff]
        %v263 = vld [vmem:[#allocation2 + $0x20] sm:$0xff]
        %v264 = vld [vmem:[#allocation2 + $0x28] sm:$0xff]
        %v265 = vld [vmem:[#allocation2 + $0x30] sm:$0xff]
        %v266 = vld [vmem:[#allocation2 + $0x38] sm:$0xff]
        %v267 = vld [vmem:[#allocation2 + $0x40] sm:$0xff]
        %v268 = vld [vmem:[#allocation2 + $0x48] sm:$0xff]
        %v269 = vld [vmem:[#allocation2 + $0x50] sm:$0xff]
        %v270 = vld [vmem:[#allocation2 + $0x58] sm:$0xff]
        %v271 = vld [vmem:[#allocation2 + $0x60] sm:$0xff]
        %v272 = vld [vmem:[#allocation2 + $0x68] sm:$0xff]
        %v273 = vld [vmem:[#allocation2 + $0x70] sm:$0xff]
        %v274 = vld [vmem:[#allocation2 + $0x78] sm:$0xff]
        %v275 = vld [vmem:[#allocation2 + $0x80] sm:$0xff]
        %v276 = vld [vmem:[#allocation2 + $0x88] sm:$0xff]
        %v277 = vld [vmem:[#allocation2 + $0x90] sm:$0xff]
        %v278 = vld [vmem:[#allocation2 + $0x98] sm:$0xff]
        %v279 = vld [vmem:[#allocation2 + $0xa0] sm:$0xff]
        %v280 = vld [vmem:[#allocation2 + $0xa8] sm:$0xff]
        %v281 = vld [vmem:[#allocation2 + $0xb0] sm:$0xff]
        %v282 = vld [vmem:[#allocation2 + $0xb8] sm:$0xff]
        %v283 = vld [vmem:[#allocation2 + $0xc0] sm:$0xff]
        %v284 = vld [vmem:[#allocation2 + $0xc8] sm:$0xff]
        %v285 = vld [vmem:[#allocation2 + $0xd0] sm:$0xff]
        %v286 = vld [vmem:[#allocation2 + $0xd8] sm:$0xff]
        %v287 = vld [vmem:[#allocation2 + $0xe0] sm:$0xff]
        %v288 = vld [vmem:[#allocation2 + $0xe8] sm:$0xff]
        %v289 = vld [vmem:[#allocation2 + $0xf0] sm:$0xff]
        %v290 = vld [vmem:[#allocation2 + $0xf8] sm:$0xff]
        %v291 = vpack.c.bf16 %v261, %v259
        %v292 = vpack.c.bf16 %v262, %v260
        %v293 = vpack.c.bf16 %v265, %v263
        %v294 = vpack.c.bf16 %v266, %v264
        %v295 = vpack.c.bf16 %v269, %v267
        %v296 = vpack.c.bf16 %v270, %v268
        %v297 = vpack.c.bf16 %v273, %v271
        %v298 = vpack.c.bf16 %v274, %v272
        %v299 = vpack.c.bf16 %v277, %v275
        %v300 = vpack.c.bf16 %v278, %v276
        %v301 = vpack.c.bf16 %v281, %v279
        %v302 = vpack.c.bf16 %v282, %v280
        %v303 = vpack.c.bf16 %v285, %v283
        %v304 = vpack.c.bf16 %v286, %v284
        %v305 = vpack.c.bf16 %v289, %v287
        %v306 = vpack.c.bf16 %v290, %v288
        %v307 = vld [vmem:[%s221] sm:$0xf]
        %v308 = vld [vmem:[%s221 + $0x4] sm:$0xf]
        %v309 = vld [vmem:[%s221 + $0x8] sm:$0xf]
        %v310 = vld [vmem:[%s221 + $0xc] sm:$0xf]
        %v311 = vld [vmem:[%s221 + $0x10] sm:$0xf]
        %v312 = vld [vmem:[%s221 + $0x14] sm:$0xf]
        %v313 = vld [vmem:[%s221 + $0x18] sm:$0xf]
        %v314 = vld [vmem:[%s221 + $0x1c] sm:$0xf]
        %v315 = vld [vmem:[%s221 + $0x20] sm:$0xf]
        %v316 = vld [vmem:[%s221 + $0x24] sm:$0xf]
        %v317 = vld [vmem:[%s221 + $0x28] sm:$0xf]
        %v318 = vld [vmem:[%s221 + $0x2c] sm:$0xf]
        %v319 = vld [vmem:[%s221 + $0x30] sm:$0xf]
        %v320 = vld [vmem:[%s221 + $0x34] sm:$0xf]
        %v321 = vld [vmem:[%s221 + $0x38] sm:$0xf]
        %v322 = vld [vmem:[%s221 + $0x3c] sm:$0xf]
        %v323 = vld [vmem:[%s221 + $0x40] sm:$0xf]
        %v324 = vld [vmem:[%s221 + $0x44] sm:$0xf]
        %v325 = vld [vmem:[%s221 + $0x48] sm:$0xf]
        %v326 = vld [vmem:[%s221 + $0x4c] sm:$0xf]
        %v327 = vld [vmem:[%s221 + $0x50] sm:$0xf]
        %v328 = vld [vmem:[%s221 + $0x54] sm:$0xf]
        %v329 = vld [vmem:[%s221 + $0x58] sm:$0xf]
        %v330 = vld [vmem:[%s221 + $0x5c] sm:$0xf]
        %v331 = vld [vmem:[%s221 + $0x60] sm:$0xf]
        %v332 = vld [vmem:[%s221 + $0x64] sm:$0xf]
        %v333 = vld [vmem:[%s221 + $0x68] sm:$0xf]
        %v334 = vld [vmem:[%s221 + $0x6c] sm:$0xf]
        %v335 = vld [vmem:[%s221 + $0x70] sm:$0xf]
        %v336 = vld [vmem:[%s221 + $0x74] sm:$0xf]
        %v337 = vld [vmem:[%s221 + $0x78] sm:$0xf]
        %v338 = vld [vmem:[%s221 + $0x7c] sm:$0xf]
        %v371 = vunpack.c.l.b16 %v307
        %v372 = vunpack.c.l.b16 %v308
        %v373 = vunpack.c.l.b16 %v309
        %v374 = vunpack.c.l.b16 %v310
        %v375 = vunpack.c.l.b16 %v311
        %v376 = vunpack.c.l.b16 %v312
        %v377 = vunpack.c.l.b16 %v313
        %v378 = vunpack.c.l.b16 %v314
        %v379 = vunpack.c.l.b16 %v315
        %v380 = vunpack.c.l.b16 %v316
        %v381 = vunpack.c.l.b16 %v317
        %v382 = vunpack.c.l.b16 %v318
        %v383 = vunpack.c.l.b16 %v319
        %v384 = vunpack.c.l.b16 %v320
        %v385 = vunpack.c.l.b16 %v321
        %v386 = vunpack.c.l.b16 %v322
        %v387 = vunpack.c.l.b16 %v323
        %v388 = vunpack.c.l.b16 %v324
        %v389 = vunpack.c.l.b16 %v325
        %v390 = vunpack.c.l.b16 %v326
        %v391 = vunpack.c.l.b16 %v327
        %v392 = vunpack.c.l.b16 %v328
        %v393 = vunpack.c.l.b16 %v329
        %v394 = vunpack.c.l.b16 %v330
        %v395 = vunpack.c.l.b16 %v331
        %v396 = vunpack.c.l.b16 %v332
        %v397 = vunpack.c.l.b16 %v333
        %v398 = vunpack.c.l.b16 %v334
        %v399 = vunpack.c.l.b16 %v335
        %v400 = vunpack.c.l.b16 %v336
        %v401 = vunpack.c.l.b16 %v337
        %v402 = vunpack.c.l.b16 %v338
        %v403 = vpack.c.b16 %v372, %v371
        %v404 = vpack.c.b16 %v374, %v373
        %v405 = vpack.c.b16 %v376, %v375
        %v406 = vpack.c.b16 %v378, %v377
        %v407 = vpack.c.b16 %v380, %v379
        %v408 = vpack.c.b16 %v382, %v381
        %v409 = vpack.c.b16 %v384, %v383
        %v410 = vpack.c.b16 %v386, %v385
        %v411 = vpack.c.b16 %v388, %v387
        %v412 = vpack.c.b16 %v390, %v389
        %v413 = vpack.c.b16 %v392, %v391
        %v414 = vpack.c.b16 %v394, %v393
        %v415 = vpack.c.b16 %v396, %v395
        %v416 = vpack.c.b16 %v398, %v397
        %v417 = vpack.c.b16 %v400, %v399
        %v418 = vpack.c.b16 %v402, %v401
        %435 = vmatprep.subr.bf16.mxu0 0
        %436 = vmatpush1.bf16.msra.mxu0 %v410
        %437 = vmatprep.subr.bf16.mxu0 0
        %438 = vmatpush1.bf16.msra.mxu0 %v409
        %439 = vmatprep.subr.bf16.mxu0 0
        %440 = vmatpush1.bf16.msra.mxu0 %v408
        %441 = vmatprep.subr.bf16.mxu0 0
        %442 = vmatpush1.bf16.msra.mxu0 %v407
        %443 = vmatprep.subr.bf16.mxu0 0
        %444 = vmatpush1.bf16.msra.mxu0 %v406
        %445 = vmatprep.subr.bf16.mxu0 0
        %446 = vmatpush1.bf16.msra.mxu0 %v405
        %447 = vmatprep.subr.bf16.mxu0 0
        %448 = vmatpush1.bf16.msra.mxu0 %v404
        %449 = vmatprep.subr.bf16.mxu0 0
        %450 = vmatpush1.bf16.msra.mxu0 %v403
        %451 = vmatprep.subr.bf16.mxu0 0
        %452 = vmatpush2.bf16.msra.mxu0 %v418
        %453 = vmatprep.subr.bf16.mxu0 0
        %454 = vmatpush2.bf16.msra.mxu0 %v417
        %455 = vmatprep.subr.bf16.mxu0 0
        %456 = vmatpush2.bf16.msra.mxu0 %v416
        %457 = vmatprep.subr.bf16.mxu0 0
        %458 = vmatpush2.bf16.msra.mxu0 %v415
        %459 = vmatprep.subr.bf16.mxu0 0
        %460 = vmatpush2.bf16.msra.mxu0 %v414
        %461 = vmatprep.subr.bf16.mxu0 0
        %462 = vmatpush2.bf16.msra.mxu0 %v413
        %463 = vmatprep.subr.bf16.mxu0 0
        %464 = vmatpush2.bf16.msra.mxu0 %v412
        %465 = vmatprep.subr.bf16.mxu0 0
        %466 = vmatpush2.bf16.msra.mxu0 %v411
        %467 = vmatprep.mubr.bf16.mxu0 %v292
        %468 = vmatmul.mubr.bf16.gmra.mxu0 %v291
        %v469 = vpop.f32.mrf.mxu0
        %v470 = vadd.f32 0.0, %v469
        %v471 = vpop.f32.mrf.mxu0
        %v472 = vpop.f32.mrf.mxu0
        %v473 = vadd.f32 0.0, %v472
        %v474 = vpop.f32.mrf.mxu0
        %475 = vmatprep.mubr.bf16.mxu0 %v294
        %476 = vmatmul.mubr.bf16.gmra.mxu0 %v293
        %v477 = vpop.f32.mrf.mxu0
        %v478 = vadd.f32 0.0, %v477
        %v479 = vpop.f32.mrf.mxu0
        %v480 = vpop.f32.mrf.mxu0
        %v481 = vadd.f32 0.0, %v480
        %v482 = vpop.f32.mrf.mxu0
        %483 = vmatprep.mubr.bf16.mxu0 %v296
        %484 = vmatmul.mubr.bf16.gmra.mxu0 %v295
        %v485 = vpop.f32.mrf.mxu0
        %v486 = vadd.f32 0.0, %v485
        %v487 = vpop.f32.mrf.mxu0
        %v488 = vpop.f32.mrf.mxu0
        %v489 = vadd.f32 0.0, %v488
        %v490 = vpop.f32.mrf.mxu0
        %491 = vmatprep.mubr.bf16.mxu0 %v298
        %492 = vmatmul.mubr.bf16.gmra.mxu0 %v297
        %v493 = vpop.f32.mrf.mxu0
        %v494 = vadd.f32 0.0, %v493
        %v495 = vpop.f32.mrf.mxu0
        %v496 = vpop.f32.mrf.mxu0
        %v497 = vadd.f32 0.0, %v496
        %v498 = vpop.f32.mrf.mxu0
        %499 = vmatprep.mubr.bf16.mxu0 %v300
        %500 = vmatmul.mubr.bf16.gmra.mxu0 %v299
        %v501 = vpop.f32.mrf.mxu0
        %v502 = vadd.f32 0.0, %v501
        %v503 = vpop.f32.mrf.mxu0
        %v504 = vpop.f32.mrf.mxu0
        %v505 = vadd.f32 0.0, %v504
        %v506 = vpop.f32.mrf.mxu0
        %507 = vmatprep.mubr.bf16.mxu0 %v302
        %508 = vmatmul.mubr.bf16.gmra.mxu0 %v301
        %v509 = vpop.f32.mrf.mxu0
        %v510 = vadd.f32 0.0, %v509
        %v511 = vpop.f32.mrf.mxu0
        %v512 = vpop.f32.mrf.mxu0
        %v513 = vadd.f32 0.0, %v512
        %v514 = vpop.f32.mrf.mxu0
        %515 = vmatprep.mubr.bf16.mxu0 %v304
        %516 = vmatmul.mubr.bf16.gmra.mxu0 %v303
        %v517 = vpop.f32.mrf.mxu0
        %v518 = vadd.f32 0.0, %v517
        %v519 = vpop.f32.mrf.mxu0
        %v520 = vpop.f32.mrf.mxu0
        %v521 = vadd.f32 0.0, %v520
        %v522 = vpop.f32.mrf.mxu0
        %523 = vmatprep.mubr.bf16.mxu0 %v306
        %524 = vmatmul.mubr.bf16.gmra.mxu0 %v305
        %v525 = vpop.f32.mrf.mxu0
        %v526 = vadd.f32 0.0, %v525
        %v527 = vpop.f32.mrf.mxu0
        %v528 = vpop.f32.mrf.mxu0
        %v529 = vadd.f32 0.0, %v528
        %v530 = vpop.f32.mrf.mxu0
        %531 = vdwg.mxu0
        %v532 = vadd.f32 %v470, %v473
        %v533 = vadd.f32 %v532, %v478
        %v534 = vadd.f32 %v533, %v481
        %v535 = vadd.f32 %v534, %v486
        %v536 = vadd.f32 %v535, %v489
        %v537 = vadd.f32 %v536, %v494
        %v538 = vadd.f32 %v537, %v497
        %v539 = vadd.f32 %v538, %v502
        %v540 = vadd.f32 %v539, %v505
        %v541 = vadd.f32 %v540, %v510
        %v542 = vadd.f32 %v541, %v513
        %v543 = vadd.f32 %v542, %v518
        %v544 = vadd.f32 %v543, %v521
        %v545 = vadd.f32 %v544, %v526
        %v546 = vadd.f32 %v545, %v529
        %v547 = vrot.slane %v546, 4
        %v548 = vadd.f32 %v546, %v547
        %v549 = vrot.slane %v548, 2
        %v550 = vadd.f32 %v548, %v549
        %v551 = vrot.slane %v550, 1
        %v552 = vadd.f32 %v550, %v551
        %v553 = vmul.f32 %v552, 0.0078125
        %v554 = vsub.f32 %v470, %v553
        %v555 = vsub.f32 %v473, %v553
        %v556 = vsub.f32 %v478, %v553
        %v557 = vsub.f32 %v481, %v553
        %v558 = vsub.f32 %v486, %v553
        %v559 = vsub.f32 %v489, %v553
        %v560 = vsub.f32 %v494, %v553
        %v561 = vsub.f32 %v497, %v553
        %v562 = vsub.f32 %v502, %v553
        %v563 = vsub.f32 %v505, %v553
        %v564 = vsub.f32 %v510, %v553
        %v565 = vsub.f32 %v513, %v553
        %v566 = vsub.f32 %v518, %v553
        %v567 = vsub.f32 %v521, %v553
        %v568 = vsub.f32 %v526, %v553
        %v569 = vsub.f32 %v529, %v553
        %v570 = vmul.f32 %v554, %v554
        %v571 = vmul.f32 %v555, %v555
        %v572 = vmul.f32 %v556, %v556
        %v573 = vmul.f32 %v557, %v557
        %v574 = vmul.f32 %v558, %v558
        %v575 = vmul.f32 %v559, %v559
        %v576 = vmul.f32 %v560, %v560
        %v577 = vmul.f32 %v561, %v561
        %v578 = vmul.f32 %v562, %v562
        %v579 = vmul.f32 %v563, %v563
        %v580 = vmul.f32 %v564, %v564
        %v581 = vmul.f32 %v565, %v565
        %v582 = vmul.f32 %v566, %v566
        %v583 = vmul.f32 %v567, %v567
        %v584 = vmul.f32 %v568, %v568
        %v585 = vmul.f32 %v569, %v569
        %v586 = vadd.f32 %v570, %v571
        %v587 = vadd.f32 %v586, %v572
        %v588 = vadd.f32 %v587, %v573
        %v589 = vadd.f32 %v588, %v574
        %v590 = vadd.f32 %v589, %v575
        %v591 = vadd.f32 %v590, %v576
        %v592 = vadd.f32 %v591, %v577
        %v593 = vadd.f32 %v592, %v578
        %v594 = vadd.f32 %v593, %v579
        %v595 = vadd.f32 %v594, %v580
        %v596 = vadd.f32 %v595, %v581
        %v597 = vadd.f32 %v596, %v582
        %v598 = vadd.f32 %v597, %v583
        %v599 = vadd.f32 %v598, %v584
        %v600 = vadd.f32 %v599, %v585
        %v601 = vrot.slane %v600, 4
        %v602 = vadd.f32 %v600, %v601
        %v603 = vrot.slane %v602, 2
        %v604 = vadd.f32 %v602, %v603
        %v605 = vrot.slane %v604, 1
        %v606 = vadd.f32 %v604, %v605
        %v607 = vmul.f32 %v606, 0.0078125
        %v608 = vadd.f32 %v607, 0.001
        %v609 = vrsqrt.pop %v608
        %v610 = vld [vmem:[%s254] sm:$0x1]
        %v611 = vmul.f32 %v609, %v610
        %v612 = vlaneseq
        %v613 = vshrl.u32 %v612, 7
        %v614 = vsub.s32 0, %v613
        %v615 = vrot.slane %v611, %v614
        %v616 = vmul.f32 %v554, %v615
        %v617 = vmul.f32 %v555, %v615
        %v618 = vmul.f32 %v556, %v615
        %v619 = vmul.f32 %v557, %v615
        %v620 = vmul.f32 %v558, %v615
        %v621 = vmul.f32 %v559, %v615
        %v622 = vmul.f32 %v560, %v615
        %v623 = vmul.f32 %v561, %v615
        %v624 = vmul.f32 %v562, %v615
        %v625 = vmul.f32 %v563, %v615
        %v626 = vmul.f32 %v564, %v615
        %v627 = vmul.f32 %v565, %v615
        %v628 = vmul.f32 %v566, %v615
        %v629 = vmul.f32 %v567, %v615
        %v630 = vmul.f32 %v568, %v615
        %v631 = vmul.f32 %v569, %v615
        %v632 = vld [vmem:[%s257] sm:$0x1]
        %v634 = vlaneseq
        %v635 = vshrl.u32 %v634, 7
        %v636 = vsub.s32 0, %v635
        %v637 = vrot.slane %v632, %v636
        %v639 = vadd.f32 %v616, %v637
        %v640 = vadd.f32 %v617, %v637
        %v641 = vadd.f32 %v618, %v637
        %v642 = vadd.f32 %v619, %v637
        %v643 = vadd.f32 %v620, %v637
        %v644 = vadd.f32 %v621, %v637
        %v645 = vadd.f32 %v622, %v637
        %v646 = vadd.f32 %v623, %v637
        %v647 = vadd.f32 %v624, %v637
        %v648 = vadd.f32 %v625, %v637
        %v649 = vadd.f32 %v626, %v637
        %v650 = vadd.f32 %v627, %v637
        %v651 = vadd.f32 %v628, %v637
        %v652 = vadd.f32 %v629, %v637
        %v653 = vadd.f32 %v630, %v637
        %v654 = vadd.f32 %v631, %v637
        %655 = vst [vmem:[%s251] sm:$0xff] %v639
        %656 = vst [vmem:[%s251 + $0x8] sm:$0xff] %v640
        %657 = vst [vmem:[%s251 + $0x10] sm:$0xff] %v641
        %658 = vst [vmem:[%s251 + $0x18] sm:$0xff] %v642
        %659 = vst [vmem:[%s251 + $0x20] sm:$0xff] %v643
        %660 = vst [vmem:[%s251 + $0x28] sm:$0xff] %v644
        %661 = vst [vmem:[%s251 + $0x30] sm:$0xff] %v645
        %662 = vst [vmem:[%s251 + $0x38] sm:$0xff] %v646
        %663 = vst [vmem:[%s251 + $0x40] sm:$0xff] %v647
        %664 = vst [vmem:[%s251 + $0x48] sm:$0xff] %v648
        %665 = vst [vmem:[%s251 + $0x50] sm:$0xff] %v649
        %666 = vst [vmem:[%s251 + $0x58] sm:$0xff] %v650
        %667 = vst [vmem:[%s251 + $0x60] sm:$0xff] %v651
        %668 = vst [vmem:[%s251 + $0x68] sm:$0xff] %v652
        %669 = vst [vmem:[%s251 + $0x70] sm:$0xff] %v653
        %670 = vst [vmem:[%s251 + $0x78] sm:$0xff] %v654
        %s671 = sand.u32 %s129, 1
        %s672 = scalar_lea.sflag [#allocation4], %s671
        %s673 = sand.u32 %s129, 1
        %s674 = smul.addr %s673, 128
        %s675 = scalar_lea.vmem [#allocation7], %s674
        // Predicated region
        $region45: #{tpu_custom_call.1} parent=35 // pred_check
          %p676 = pneg %p139
        $region46: #{tpu_custom_call.1} parent=35 // pred_check_branch
          %678 = sbr.rel (%p676) target = $region48
        $region47: #{tpu_custom_call.1} parent=35 // pred_region
          %s680 = ssub.s32 2048, 2048
          %681 = vsyncadd %s672, %s680
          %s682 = smul.addr %s22, 128
          %s683 = scalar_lea.hbm %s4, %s682
          %s684 = sshll.u32 %s675, 4
          %s685 = int_to_ptr.vmem [resolvable:$true] %s684
          %690 = dma.vmem_to_hbm [thread:$0]  %s685, 2048, %s683, %s672, 128, 256, 8
        $region48: #{tpu_custom_call.1} parent=35 // pred_fallthru
          _
      $region36: #{tpu_custom_call.1} parent=5 // pred_fallthru
        _
      %p691 = scmp.le.s32.totalorder 2, %s17
      // Predicated region
      $region49: #{tpu_custom_call.1} parent=5 // pred_check
        %p692 = pneg %p691
      $region50: #{tpu_custom_call.1} parent=5 // pred_check_branch
        %694 = sbr.rel (%p692) target = $region52
      $region51: #{tpu_custom_call.1} parent=5 // pred_region
        %s695 = ssub.s32 %s17, 2
        // Predicated region
        $region53: #{tpu_custom_call.1} parent=51 // pred_check
          %p696 = pneg %p145
        $region54: #{tpu_custom_call.1} parent=51 // pred_check_branch
          %698 = sbr.rel (%p696) target = $region56
        $region55: #{tpu_custom_call.1} parent=51 // pred_region
          %s699 = sand.u32 %s130, 1
          %s700 = scalar_lea.sflag [#allocation4], %s699
          %s701 = sand.u32 %s130, 1
          %s702 = smul.addr %s701, 128
          %s703 = scalar_lea.vmem [#allocation7], %s702
          %704 = dma.done %s700, 2048
        $region56: #{tpu_custom_call.1} parent=51 // pred_fallthru
          _
      $region52: #{tpu_custom_call.1} parent=5 // pred_fallthru
        _
    $region6: #{tpu_custom_call.1} parent=1 // loop_footer
      %s21 = sadd.s32 1, %s17
    $region7: #{tpu_custom_call.1} parent=1 // loop_footer_branch
      %16 = sbr.rel target = $region3
    $region8: #{tpu_custom_call.1} parent=1 // loop_exit
      _
    %705 = vsyncpa [#allocation3], 1
    %s706 = scalar_lea.sflag [#allocation3], 1
    %707 = vsyncpa %s706, 1
    %708 = vsyncpa [#allocation6], 1
    %s709 = scalar_lea.sflag [#allocation6], 1
    %710 = vsyncpa %s709, 1
    %711 = vsyncpa [#allocation4], 1
    %s712 = scalar_lea.sflag [#allocation4], 1
    %713 = vsyncpa %s712, 1

</llo_original>
